<compile_context>
chip_gen: v6e
topology: v6e:2x2x1
jax: 0.10.0
libtpu: 0.0.40
codegen_flags: <defaults>
</compile_context>

<pallas_src>
import functools

import jax
import jax.numpy as jnp
from jax.experimental import pallas as pl
from jax.experimental.pallas import tpu as pltpu

EPS = 1e-10
_PAD_NEG = -1e9                              # exp(0.5 * _PAD_NEG) == 0.0 exactly
_SINGLE_BLOCK_MAX_BYTES = 2 * 1024 * 1024    # total input bytes for the fast path


def _finalize_loss(st, tt, ss):
    # sum((alpha*tar - src)^2) == alpha^2*tt - 2*alpha*st + ss  (exact algebra);
    # clamp at 0 before adding EPS to guard against rounding-induced negatives.
    alpha = st / (tt + EPS)
    ayy = alpha * alpha * tt
    norm = jnp.maximum(ayy - 2.0 * alpha * st + ss, 0.0) + EPS
    return -10.0 * jnp.log10(ayy / norm + EPS)


# --------------------- single-block fast path (tiny inputs) ---------------------

def _sisdr_small_kernel(pred_ref, tar_ref, loss_ref):
    # exp(x) ** 0.5 == exp(0.5 * x)
    src = jnp.exp(pred_ref[...].astype(jnp.float32) * 0.5)
    tar = jnp.exp(tar_ref[...].astype(jnp.float32) * 0.5)
    st = jnp.sum(src * tar, axis=1, keepdims=True)
    tt = jnp.sum(tar * tar, axis=1, keepdims=True)
    ss = jnp.sum(src * src, axis=1, keepdims=True)
    loss_ref[...] = _finalize_loss(st, tt, ss)


def _sisdr_small(pred2d, tar2d):
    B = pred2d.shape[0]
    per_row = pl.pallas_call(
        _sisdr_small_kernel,
        out_shape=jax.ShapeDtypeStruct((B, 1), jnp.float32),
        in_specs=[
            pl.BlockSpec(memory_space=pltpu.MemorySpace.VMEM),
            pl.BlockSpec(memory_space=pltpu.MemorySpace.VMEM),
        ],
        out_specs=pl.BlockSpec(memory_space=pltpu.MemorySpace.VMEM),
    )(pred2d, tar2d)
    return jnp.mean(per_row)


# ------------------- gridded streaming path (realistic inputs) ------------------

def _sisdr_grid_kernel(pred_ref, tar_ref, loss_ref, st_acc, tt_acc, ss_acc):
    k = pl.program_id(1)

    @pl.when(k == 0)
    def _():
        st_acc[...] = jnp.zeros_like(st_acc)
        tt_acc[...] = jnp.zeros_like(tt_acc)
        ss_acc[...] = jnp.zeros_like(ss_acc)

    src = jnp.exp(pred_ref[...].astype(jnp.float32) * 0.5)
    tar = jnp.exp(tar_ref[...].astype(jnp.float32) * 0.5)

    st_acc[...] += jnp.sum(src * tar, axis=1, keepdims=True)
    tt_acc[...] += jnp.sum(tar * tar, axis=1, keepdims=True)
    ss_acc[...] += jnp.sum(src * src, axis=1, keepdims=True)

    @pl.when(k == pl.num_programs(1) - 1)
    def _():
        loss_ref[...] = _finalize_loss(st_acc[...], tt_acc[...], ss_acc[...])


def _round_up(x, m):
    return (x + m - 1) // m * m


def _pick_tile(padded, candidates):
    for c in candidates:
        if padded % c == 0:
            return c
    return candidates[-1]


def _sisdr_grid(pred2d, tar2d):
    B, N = pred2d.shape
    Bp = _round_up(B, 8)
    Np = _round_up(N, 128)

    tb = _pick_tile(Bp, (128, 64, 32, 16, 8))
    tn = _pick_tile(Np, (2048, 1024, 512, 256, 128))

    pad_b, pad_n = Bp - B, Np - N
    if pad_b or pad_n:
        # Pad with a large negative value: exp(0.5 * pad) == 0, so padded
        # lanes contribute nothing to st/tt/ss; padded rows are sliced off
        # before the batch mean.
        pred2d = jnp.pad(pred2d, ((0, pad_b), (0, pad_n)), constant_values=_PAD_NEG)
        tar2d = jnp.pad(tar2d, ((0, pad_b), (0, pad_n)), constant_values=_PAD_NEG)

    grid = (Bp // tb, Np // tn)

    per_row = pl.pallas_call(
        _sisdr_grid_kernel,
        out_shape=jax.ShapeDtypeStruct((Bp, 1), jnp.float32),
        grid_spec=pltpu.PrefetchScalarGridSpec(
            num_scalar_prefetch=0,
            grid=grid,
            in_specs=[
                pl.BlockSpec((tb, tn), lambda i, k: (i, k)),
                pl.BlockSpec((tb, tn), lambda i, k: (i, k)),
            ],
            out_specs=pl.BlockSpec((tb, 1), lambda i, k: (i, 0)),
            scratch_shapes=[
                pltpu.VMEM((tb, 1), jnp.float32),
                pltpu.VMEM((tb, 1), jnp.float32),
                pltpu.VMEM((tb, 1), jnp.float32),
            ],
        ),
        compiler_params=pltpu.CompilerParams(
            dimension_semantics=("parallel", "arbitrary"),
        ),
    )(pred2d, tar2d)

    # Final mean over the real batch rows (trivial glue, matches loss.mean()).
    return jnp.mean(per_row[:B, 0])


# --------------------------------- public API -----------------------------------

def sisdr_loss(predicted, linear_tar, force_grid=None):
    """Pallas implementation of SISDR.forward(predicted, linear_tar)."""
    assert predicted.shape == linear_tar.shape
    B = predicted.shape[0]
    pred2d = predicted.reshape(B, -1)    # flatten(start_dim=1); keep native dtype
    tar2d = linear_tar.reshape(B, -1)

    total_bytes = 2 * pred2d.size * pred2d.dtype.itemsize
    use_grid = (total_bytes > _SINGLE_BLOCK_MAX_BYTES) if force_grid is None else force_grid
    if use_grid:
        return _sisdr_grid(pred2d, tar2d)
    return _sisdr_small(pred2d, tar2d)


# ------------------------------ self-check / demo -------------------------------

def _sisdr_ref(predicted, linear_tar):
    """Pure-JAX reference matching the PyTorch module (two-pass form)."""
    B = predicted.shape[0]
    src = jnp.exp(predicted.astype(jnp.float32) * 0.5).reshape(B, -1)
    tar = jnp.exp(linear_tar.astype(jnp.float32) * 0.5).reshape(B, -1)
    alpha = jnp.sum(src * tar, axis=1) / (jnp.sum(tar * tar, axis=1) + EPS)
    ay = alpha[:, None] * tar
    norm = jnp.sum((ay - src) ** 2, axis=1) + EPS
    loss = -10.0 * jnp.log10(jnp.sum(ay * ay, axis=1) / norm + EPS)
    return jnp.mean(loss)


if __name__ == "__main__":
    key = jax.random.PRNGKey(0)
    k1, k2, k3, k4 = jax.random.split(key, 4)

    # (1) Tiny (B, C, F, T) log-spectrogram -> single-block fast path.
    B, C, F, T = 2, 4, 16, 16
    pred_s = jax.random.normal(k1, (B, C, F, T), dtype=jnp.float32)
    tar_s = jax.random.normal(k2, (B, C, F, T), dtype=jnp.float32)
    loss_s = jax.jit(sisdr_loss)(pred_s, tar_s)
    jax.block_until_ready(loss_s)
    ref_s = _sisdr_ref(pred_s, tar_s)
    assert jnp.allclose(loss_s, ref_s, rtol=1e-4, atol=1e-4), (loss_s, ref_s)

    # (2) Ragged small shape, gridded/streaming path (forced here so it is
    #     exercised at test size; auto-selected at realistic sizes).
    B2, C2, F2, T2 = 3, 4, 20, 48        # N = 3840, B not a multiple of 8
    pred_g = jax.random.normal(k3, (B2, C2, F2, T2), dtype=jnp.float32)
    tar_g = jax.random.normal(k4, (B2, C2, F2, T2), dtype=jnp.float32)
    grid_fn = jax.jit(functools.partial(sisdr_loss, force_grid=True))
    loss_g = grid_fn(pred_g, tar_g)
    jax.block_until_ready(loss_g)
    ref_g = _sisdr_ref(pred_g, tar_g)
    assert jnp.allclose(loss_g, ref_g, rtol=1e-4, atol=1e-4), (loss_g, ref_g)

    print("KERNEL_OK")
</pallas_src>

<mosaic_0001>
module attributes {stable_mosaic.version = 11 : i64} {
  func.func @_sisdr_small_kernel(%arg0: memref<2x1024xf32, #tpu.memory_space<vmem>>, %arg1: memref<2x1024xf32, #tpu.memory_space<vmem>>, %arg2: memref<2x1xf32, #tpu.memory_space<vmem>>) attributes {dimension_semantics = [], scalar_prefetch = 0 : i64, scratch_operands = 0 : i64, tpu.core_type = #tpu.core_type<tc>} {
    %c0 = arith.constant 0 : index
    %c0_0 = arith.constant 0 : index
    %0 = vector.load %arg0[%c0, %c0_0] : memref<2x1024xf32, #tpu.memory_space<vmem>>, vector<2x1024xf32>
    %cst = arith.constant 5.000000e-01 : f32
    %1 = vector.broadcast %cst : f32 to vector<2x1024xf32>
    %2 = arith.mulf %0, %1 : vector<2x1024xf32>
    %3 = math.exp %2 : vector<2x1024xf32>
    %c0_1 = arith.constant 0 : index
    %c0_2 = arith.constant 0 : index
    %4 = vector.load %arg1[%c0_1, %c0_2] : memref<2x1024xf32, #tpu.memory_space<vmem>>, vector<2x1024xf32>
    %cst_3 = arith.constant 5.000000e-01 : f32
    %5 = vector.broadcast %cst_3 : f32 to vector<2x1024xf32>
    %6 = arith.mulf %4, %5 : vector<2x1024xf32>
    %7 = math.exp %6 : vector<2x1024xf32>
    %8 = arith.mulf %3, %7 : vector<2x1024xf32>
    %cst_4 = arith.constant dense<0.000000e+00> : vector<2xf32>
    %9 = vector.multi_reduction <add>, %8, %cst_4 [1] : vector<2x1024xf32> to vector<2xf32>
    %10 = vector.shape_cast %9 : vector<2xf32> to vector<2x1xf32>
    %11 = arith.mulf %7, %7 : vector<2x1024xf32>
    %cst_5 = arith.constant dense<0.000000e+00> : vector<2xf32>
    %12 = vector.multi_reduction <add>, %11, %cst_5 [1] : vector<2x1024xf32> to vector<2xf32>
    %13 = vector.shape_cast %12 : vector<2xf32> to vector<2x1xf32>
    %14 = arith.mulf %3, %3 : vector<2x1024xf32>
    %cst_6 = arith.constant dense<0.000000e+00> : vector<2xf32>
    %15 = vector.multi_reduction <add>, %14, %cst_6 [1] : vector<2x1024xf32> to vector<2xf32>
    %16 = vector.shape_cast %15 : vector<2xf32> to vector<2x1xf32>
    %cst_7 = arith.constant 1.000000e-10 : f32
    %17 = vector.broadcast %cst_7 : f32 to vector<2x1xf32>
    %18 = arith.addf %13, %17 : vector<2x1xf32>
    %19 = arith.divf %10, %18 : vector<2x1xf32>
    %20 = arith.mulf %19, %19 : vector<2x1xf32>
    %21 = arith.mulf %20, %13 : vector<2x1xf32>
    %cst_8 = arith.constant 2.000000e+00 : f32
    %22 = vector.broadcast %cst_8 : f32 to vector<2x1xf32>
    %23 = arith.mulf %22, %19 : vector<2x1xf32>
    %24 = arith.mulf %23, %10 : vector<2x1xf32>
    %25 = arith.subf %21, %24 : vector<2x1xf32>
    %26 = arith.addf %25, %16 : vector<2x1xf32>
    %cst_9 = arith.constant 0.000000e+00 : f32
    %27 = vector.broadcast %cst_9 : f32 to vector<2x1xf32>
    %28 = arith.maximumf %26, %27 : vector<2x1xf32>
    %cst_10 = arith.constant 1.000000e-10 : f32
    %29 = vector.broadcast %cst_10 : f32 to vector<2x1xf32>
    %30 = arith.addf %28, %29 : vector<2x1xf32>
    %31 = arith.divf %21, %30 : vector<2x1xf32>
    %cst_11 = arith.constant 1.000000e-10 : f32
    %32 = vector.broadcast %cst_11 : f32 to vector<2x1xf32>
    %33 = arith.addf %31, %32 : vector<2x1xf32>
    %34 = math.log %33 : vector<2x1xf32>
    %cst_12 = arith.constant 0.434294492 : f32
    %35 = vector.broadcast %cst_12 : f32 to vector<2x1xf32>
    %36 = arith.mulf %34, %35 : vector<2x1xf32>
    %cst_13 = arith.constant -1.000000e+01 : f32
    %37 = vector.broadcast %cst_13 : f32 to vector<2x1xf32>
    %38 = arith.mulf %37, %36 : vector<2x1xf32>
    %c0_14 = arith.constant 0 : index
    %c0_15 = arith.constant 0 : index
    %39 = vector.load %arg2[%c0_14, %c0_15] : memref<2x1xf32, #tpu.memory_space<vmem>>, vector<2x1xf32>
    tpu.vector_store %arg2[%c0_14, %c0_15], %38 {strides = array<i32>} : memref<2x1xf32, #tpu.memory_space<vmem>>, vector<2x1xf32>,
    return
  }
}

</mosaic_0001>

<llo_original>
// kernel: sisdr_loss.1
$region0: #{sisdr_loss.1}
  #allocation0 [shape = 'u32[]', space=smem, size = 0x4, offset = 0x4, fixed_abs, tag = 'smem constant byte address 0x4 - core index']
  #allocation1 [shape = 'u32[144,128]{1,0:T(1,128)}', space=vmem, size = 0x12000, scoped, tag = 'internal scratch']
  %s0 = inlined_call_operand.vmem [shape: f32[2,1024], index: 0, kind: input, shape index: {}]
  %s1 = inlined_call_operand.vmem [shape: f32[2,1024], index: 1, kind: input, shape index: {}]
  %s2 = inlined_call_operand.vmem [shape: f32[2,1], index: 2, kind: output, shape index: {}]
  %s3 = sld [smem:[#allocation0]]
  $region18: #{sisdr_loss.1} parent=0
    _
  %s5 = ssub.s32 1, %s3
  %s6 = scalar_select 0, %s5, %s3
  // Predicated region
  $region2: #{sisdr_loss.1} parent=0 // pred_check
    _
  $region3: #{sisdr_loss.1} parent=0 // pred_check_branch
    %8 = sbr.rel (0) target = $region5
  $region4: #{sisdr_loss.1} parent=0 // pred_region
    _
  $region5: #{sisdr_loss.1} parent=0 // pred_fallthru
    _
  // Predicated region
  $region6: #{sisdr_loss.1} parent=0 // pred_check
    _
  $region7: #{sisdr_loss.1} parent=0 // pred_check_branch
    %10 = sbr.rel (0) target = $region9
  $region8: #{sisdr_loss.1} parent=0 // pred_region
    _
  $region9: #{sisdr_loss.1} parent=0 // pred_fallthru
    _
  %v11 = vld [vmem:[%s0] sm:$0xff]
  %v12 = vld [vmem:[%s0 + $0x8] sm:$0xff]
  %v13 = vmul.f32 %v11, 0.5
  %v14 = vmul.f32 %v12, 0.5
  %v15 = vmul.f32 %v13, 1.442695
  %v16 = vpow.pop %v15
  %v17 = vmul.f32 %v14, 1.442695
  %v18 = vpow.pop %v17
  %v19 = vld [vmem:[%s1] sm:$0xff]
  %v20 = vld [vmem:[%s1 + $0x8] sm:$0xff]
  %v21 = vmul.f32 %v19, 0.5
  %v22 = vmul.f32 %v20, 0.5
  %v23 = vmul.f32 %v21, 1.442695
  %v24 = vpow.pop %v23
  %v25 = vmul.f32 %v22, 1.442695
  %v26 = vpow.pop %v25
  %v27 = vmul.f32 %v16, %v24
  %v28 = vmul.f32 %v18, %v26
  %v31 = vcombine.high %v27, %v27
  %v33 = vunpack.c.l.s4 1983009808
  %v34 = vunpack.c.0.s8 %v33
  %v35 = vlaneseq
  %v36 = vshrl.u32 %v35, 7
  %v37 = vsub.s32 %v34, %v36
  %v38 = vrot.slane %v27, %v37
  %v40 = vunpack.c.l.s4 1983009808
  %v41 = vunpack.c.0.s8 %v40
  %v42 = vlaneseq
  %v43 = vshrl.u32 %v42, 7
  %v44 = vsub.s32 %v41, %v43
  %v45 = vrot.slane %v31, %v44
  %v46 = vcombine.high %v38, %v38
  %v47 = vcombine.high %v45, %v45
  %v48 = vcombine.high %v28, %v28
  %v50 = vunpack.c.l.s4 1983009808
  %v51 = vunpack.c.0.s8 %v50
  %v52 = vlaneseq
  %v53 = vshrl.u32 %v52, 7
  %v54 = vsub.s32 %v51, %v53
  %v55 = vrot.slane %v28, %v54
  %v57 = vunpack.c.l.s4 1983009808
  %v58 = vunpack.c.0.s8 %v57
  %v59 = vlaneseq
  %v60 = vshrl.u32 %v59, 7
  %v61 = vsub.s32 %v58, %v60
  %v62 = vrot.slane %v48, %v61
  %v63 = vcombine.high %v55, %v55
  %v64 = vcombine.high %v62, %v62
  %vm73 = vcmask 1041408
  %v74 = vsel %vm73, %v38, 0.0
  %v75 = vsel %vm73, %v46, 0.0
  %v76 = vadd.f32 %v74, %v75
  %v77 = vsel %vm73, %v45, 0.0
  %v78 = vadd.f32 %v76, %v77
  %v79 = vsel %vm73, %v47, 0.0
  %v80 = vadd.f32 %v78, %v79
  %v81 = vsel %vm73, %v55, 0.0
  %v82 = vadd.f32 %v80, %v81
  %v83 = vsel %vm73, %v63, 0.0
  %v84 = vadd.f32 %v82, %v83
  %v85 = vsel %vm73, %v62, 0.0
  %v86 = vadd.f32 %v84, %v85
  %v87 = vsel %vm73, %v64, 0.0
  %v88 = vadd.f32 %v86, %v87
  %89 = vadd.xlane.f32.xlu0 %v88
  %v90 = vpop.xlane.xlu0 %89
  %v91 = vmul.f32 %v24, %v24
  %v92 = vmul.f32 %v26, %v26
  %v95 = vcombine.high %v91, %v91
  %v97 = vunpack.c.l.s4 1983009808
  %v98 = vunpack.c.0.s8 %v97
  %v99 = vlaneseq
  %v100 = vshrl.u32 %v99, 7
  %v101 = vsub.s32 %v98, %v100
  %v102 = vrot.slane %v91, %v101
  %v104 = vunpack.c.l.s4 1983009808
  %v105 = vunpack.c.0.s8 %v104
  %v106 = vlaneseq
  %v107 = vshrl.u32 %v106, 7
  %v108 = vsub.s32 %v105, %v107
  %v109 = vrot.slane %v95, %v108
  %v110 = vcombine.high %v102, %v102
  %v111 = vcombine.high %v109, %v109
  %v112 = vcombine.high %v92, %v92
  %v114 = vunpack.c.l.s4 1983009808
  %v115 = vunpack.c.0.s8 %v114
  %v116 = vlaneseq
  %v117 = vshrl.u32 %v116, 7
  %v118 = vsub.s32 %v115, %v117
  %v119 = vrot.slane %v92, %v118
  %v121 = vunpack.c.l.s4 1983009808
  %v122 = vunpack.c.0.s8 %v121
  %v123 = vlaneseq
  %v124 = vshrl.u32 %v123, 7
  %v125 = vsub.s32 %v122, %v124
  %v126 = vrot.slane %v112, %v125
  %v127 = vcombine.high %v119, %v119
  %v128 = vcombine.high %v126, %v126
  %v137 = vsel %vm73, %v102, 0.0
  %v138 = vsel %vm73, %v110, 0.0
  %v139 = vadd.f32 %v137, %v138
  %v140 = vsel %vm73, %v109, 0.0
  %v141 = vadd.f32 %v139, %v140
  %v142 = vsel %vm73, %v111, 0.0
  %v143 = vadd.f32 %v141, %v142
  %v144 = vsel %vm73, %v119, 0.0
  %v145 = vadd.f32 %v143, %v144
  %v146 = vsel %vm73, %v127, 0.0
  %v147 = vadd.f32 %v145, %v146
  %v148 = vsel %vm73, %v126, 0.0
  %v149 = vadd.f32 %v147, %v148
  %v150 = vsel %vm73, %v128, 0.0
  %v151 = vadd.f32 %v149, %v150
  %152 = vadd.xlane.f32.xlu0 %v151
  %v153 = vpop.xlane.xlu0 %152
  %v154 = vmul.f32 %v16, %v16
  %v155 = vmul.f32 %v18, %v18
  %v158 = vcombine.high %v154, %v154
  %v160 = vunpack.c.l.s4 1983009808
  %v161 = vunpack.c.0.s8 %v160
  %v162 = vlaneseq
  %v163 = vshrl.u32 %v162, 7
  %v164 = vsub.s32 %v161, %v163
  %v165 = vrot.slane %v154, %v164
  %v167 = vunpack.c.l.s4 1983009808
  %v168 = vunpack.c.0.s8 %v167
  %v169 = vlaneseq
  %v170 = vshrl.u32 %v169, 7
  %v171 = vsub.s32 %v168, %v170
  %v172 = vrot.slane %v158, %v171
  %v173 = vcombine.high %v165, %v165
  %v174 = vcombine.high %v172, %v172
  %v175 = vcombine.high %v155, %v155
  %v177 = vunpack.c.l.s4 1983009808
  %v178 = vunpack.c.0.s8 %v177
  %v179 = vlaneseq
  %v180 = vshrl.u32 %v179, 7
  %v181 = vsub.s32 %v178, %v180
  %v182 = vrot.slane %v155, %v181
  %v184 = vunpack.c.l.s4 1983009808
  %v185 = vunpack.c.0.s8 %v184
  %v186 = vlaneseq
  %v187 = vshrl.u32 %v186, 7
  %v188 = vsub.s32 %v185, %v187
  %v189 = vrot.slane %v175, %v188
  %v190 = vcombine.high %v182, %v182
  %v191 = vcombine.high %v189, %v189
  %v200 = vsel %vm73, %v165, 0.0
  %v201 = vsel %vm73, %v173, 0.0
  %v202 = vadd.f32 %v200, %v201
  %v203 = vsel %vm73, %v172, 0.0
  %v204 = vadd.f32 %v202, %v203
  %v205 = vsel %vm73, %v174, 0.0
  %v206 = vadd.f32 %v204, %v205
  %v207 = vsel %vm73, %v182, 0.0
  %v208 = vadd.f32 %v206, %v207
  %v209 = vsel %vm73, %v190, 0.0
  %v210 = vadd.f32 %v208, %v209
  %v211 = vsel %vm73, %v189, 0.0
  %v212 = vadd.f32 %v210, %v211
  %v213 = vsel %vm73, %v191, 0.0
  %v214 = vadd.f32 %v212, %v213
  %215 = vadd.xlane.f32.xlu0 %v214
  %v216 = vpop.xlane.xlu0 %215
  %v217 = vadd.f32 %v153, 1e-10
  %v218 = vrcp.pop %v217
  %v219 = vmul.f32 %v90, %v218
  %v220 = vmul.f32 %v219, %v219
  %v221 = vmul.f32 %v220, %v153
  %v222 = vmul.f32 %v219, 2.0
  %v223 = vmul.f32 %v222, %v90
  %v224 = vsub.f32 %v221, %v223
  %v225 = vadd.f32 %v224, %v216
  %v226 = vmax.f32 %v225, 0.0
  %v227 = vadd.f32 %v226, 1e-10
  %v228 = vrcp.pop %v227
  %v229 = vmul.f32 %v221, %v228
  %v230 = vadd.f32 %v229, 1e-10
  %v231 = vlog2.pop %v230
  %v232 = vmul.f32 %v231, 0.6931472
  %v233 = vmul.f32 %v232, 0.4342945
  %v234 = vmul.f32 %v233, -10.0
  %vm235 = vcmask 1024
  %236 = vst.msk [vmem:[%s2] sm:$0x3] %vm235, %v234
  // Predicated region
  $region10: #{sisdr_loss.1} parent=0 // pred_check
    _
  $region11: #{sisdr_loss.1} parent=0 // pred_check_branch
    %238 = sbr.rel (0) target = $region13
  $region12: #{sisdr_loss.1} parent=0 // pred_region
    _
  $region13: #{sisdr_loss.1} parent=0 // pred_fallthru
    _
  // Predicated region
  $region14: #{sisdr_loss.1} parent=0 // pred_check
    _
  $region15: #{sisdr_loss.1} parent=0 // pred_check_branch
    %240 = sbr.rel (0) target = $region17
  $region16: #{sisdr_loss.1} parent=0 // pred_region
    _
  $region17: #{sisdr_loss.1} parent=0 // pred_fallthru
    _

</llo_original>
